<compile_context>
chip_gen: v5e
topology: v5e:2x2
jax: 0.10.0
libtpu: 0.0.40
codegen_flags: <defaults>
</compile_context>

<pallas_src>
import functools

import jax
import jax.numpy as jnp
from jax.experimental import pallas as pl
from jax.experimental.pallas import tpu as pltpu


DIM_MLP = 2048


def _round_up(v, m):
    return ((v + m - 1) // m) * m


# ---------------------------------------------------------------------------
# Pallas kernels
# ---------------------------------------------------------------------------
def _linear_kernel(x_ref, w_ref, b_ref, o_ref, acc_ref, *, relu, l2norm):
    """Tiled linear: accumulate in an f32 VMEM scratch, write epilogue on last K step."""
    k = pl.program_id(2)

    @pl.when(k == 0)
    def _():
        acc_ref[...] = jnp.zeros_like(acc_ref)

    acc_ref[...] += jnp.dot(x_ref[...], w_ref[...],
                            preferred_element_type=jnp.float32)

    @pl.when(k == pl.num_programs(2) - 1)
    def _():
        out = acc_ref[...] + b_ref[...]
        if relu:
            out = jnp.maximum(out, 0.0)
        if l2norm:
            ssq = jnp.sum(out * out, axis=-1, keepdims=True)
            out = out * jax.lax.rsqrt(ssq + 1e-24)
        o_ref[...] = out.astype(o_ref.dtype)


def pallas_linear(x, w_bf16, b_row, out_cols, *, relu=False, l2norm=False,
                  out_dtype=jnp.float32, tm=256, tn=1024, kt=2048):
    """y[:, :out_cols] = x @ W + b with optional ReLU / row L2-normalize.

    `w_bf16` / `b_row` are pre-padded bf16 / f32 shadows (K_pad x N_pad, 1 x N_pad),
    built once outside the hot path.  Only the activations are cast/padded per call.
    """
    M, K = x.shape
    K_pad, N_pad = w_bf16.shape

    tm_eff = min(tm, _round_up(M, 8))
    M_pad = _round_up(M, tm_eff)
    tn_eff = N_pad if l2norm else min(tn, N_pad)
    if N_pad % tn_eff:
        tn_eff = 128
    kt_eff = min(kt, K_pad)
    if K_pad % kt_eff:
        kt_eff = K_pad

    xb = jnp.pad(x.astype(jnp.bfloat16), ((0, M_pad - M), (0, K_pad - K)))

    grid = (M_pad // tm_eff, N_pad // tn_eff, K_pad // kt_eff)
    kernel = functools.partial(_linear_kernel, relu=relu, l2norm=l2norm)

    out = pl.pallas_call(
        kernel,
        out_shape=jax.ShapeDtypeStruct((M_pad, N_pad), out_dtype),
        grid_spec=pltpu.PrefetchScalarGridSpec(
            num_scalar_prefetch=0,
            grid=grid,
            in_specs=[
                pl.BlockSpec((tm_eff, kt_eff), lambda i, j, k: (i, k)),
                pl.BlockSpec((kt_eff, tn_eff), lambda i, j, k: (k, j)),
                pl.BlockSpec((1, tn_eff), lambda i, j, k: (0, j)),
            ],
            out_specs=pl.BlockSpec((tm_eff, tn_eff), lambda i, j, k: (i, j)),
            scratch_shapes=[pltpu.VMEM((tm_eff, tn_eff), jnp.float32)],
        ),
        compiler_params=pltpu.CompilerParams(
            dimension_semantics=("parallel", "parallel", "arbitrary"),
            vmem_limit_bytes=48 * 1024 * 1024,
        ),
    )(xb, w_bf16, b_row)
    return out[:M, :out_cols]


def _proj_head_kernel(x_ref, w1_ref, b1_ref, w2_ref, b2_ref, o_ref, h_sc, *, tn1):
    """Fused MLP head: h = relu(x@W1+b1) kept in VMEM; out = normalize(h@W2+b2)."""
    j = pl.program_id(1)

    # Layer 1 tile: (M, 2048) @ (2048, tn1) -> ReLU -> bf16 VMEM-resident intermediate.
    h = jnp.dot(x_ref[...], w1_ref[...], preferred_element_type=jnp.float32)
    h = jnp.maximum(h + b1_ref[...], 0.0)
    off = pl.multiple_of(j * tn1, tn1)
    h_sc[:, pl.ds(off, tn1)] = h.astype(h_sc.dtype)

    @pl.when(j == pl.num_programs(1) - 1)
    def _():
        # Layer 2 + F.normalize(dim=1). W2 block index is constant across j so it
        # is DMA'd only once per head; padded output columns are zero (zero W2/b2
        # padding) and do not perturb the norm.
        out = jnp.dot(h_sc[...], w2_ref[...],
                      preferred_element_type=jnp.float32) + b2_ref[...]
        ssq = jnp.sum(out * out, axis=-1, keepdims=True)
        out = out * jax.lax.rsqrt(ssq + 1e-24)
        o_ref[...] = out.astype(o_ref.dtype)


def pallas_projection_heads(feats_q, feats_k, fc_shadows, *, dim, tn1=1024):
    """Run q_fc on feats_q and k_fc on feats_k in ONE pallas_call (stacked heads)."""
    B, D = feats_q.shape
    M_pad = _round_up(B, 8)

    x = jnp.stack([feats_q, feats_k]).astype(jnp.bfloat16)     # (2, B, D)
    x = jnp.pad(x, ((0, 0), (0, M_pad - B), (0, 0)))

    w1, b1 = fc_shadows["w1"], fc_shadows["b1"]                 # (2,D,D) bf16 / (2,1,D)
    w2, b2 = fc_shadows["w2"], fc_shadows["b2"]                 # (2,D,d_out) / (2,1,d_out)
    d_out = w2.shape[-1]

    tn1_eff = min(tn1, D)
    if D % tn1_eff:
        tn1_eff = D
    nj = D // tn1_eff

    out = pl.pallas_call(
        functools.partial(_proj_head_kernel, tn1=tn1_eff),
        out_shape=jax.ShapeDtypeStruct((2, M_pad, d_out), jnp.float32),
        grid_spec=pltpu.PrefetchScalarGridSpec(
            num_scalar_prefetch=0,
            grid=(2, nj),                                       # (head, W1-N tile)
            in_specs=[
                pl.BlockSpec((None, M_pad, D), lambda h, j: (h, 0, 0)),     # x
                pl.BlockSpec((None, D, tn1_eff), lambda h, j: (h, 0, j)),   # W1 tile
                pl.BlockSpec((None, 1, tn1_eff), lambda h, j: (h, 0, j)),   # b1 tile
                pl.BlockSpec((None, D, d_out), lambda h, j: (h, 0, 0)),     # W2
                pl.BlockSpec((None, 1, d_out), lambda h, j: (h, 0, 0)),     # b2
            ],
            out_specs=pl.BlockSpec((None, M_pad, d_out), lambda h, j: (h, 0, 0)),
            scratch_shapes=[pltpu.VMEM((M_pad, D), jnp.bfloat16)],          # resident h
        ),
        compiler_params=pltpu.CompilerParams(
            # head axis parallel -> one head per TensorCore on v7x megacore.
            dimension_semantics=("parallel", "arbitrary"),
            vmem_limit_bytes=48 * 1024 * 1024,
        ),
    )(x, w1, b1, w2, b2)

    q = out[0, :B, :dim]
    k = out[1, :B, :dim]
    return q, k


def _contrastive_kernel(qs_ref, k_ref, queue_ref, lq_ref, lk_ref, loss_ref,
                        pos_sc, neg_sc, *, rows_valid, cols_valid, tm, tk):
    """Online contrastive loss: batch tiles on axis 0 (parallel), queue tiles on axis 1."""
    i = pl.program_id(0)
    j = pl.program_id(1)

    @pl.when(j == 0)
    def _():
        # l_pos / T  (1/T already folded into qs), exact f32.
        pos_sc[...] = jnp.sum(qs_ref[...] * k_ref[...], axis=-1, keepdims=True)
        neg_sc[...] = jnp.zeros_like(neg_sc)

    # l_neg / T : bf16 MXU matmul, f32 accumulation.  (tm, tk)
    logits_neg = jnp.dot(qs_ref[...].astype(jnp.bfloat16), queue_ref[...],
                         preferred_element_type=jnp.float32)
    same = lq_ref[...] == lk_ref[...]                           # label mask
    col_ids = j * tk + jax.lax.broadcasted_iota(jnp.int32, (tm, tk), 1)
    keep = jnp.logical_and(jnp.logical_not(same), col_ids < cols_valid)
    # NOTE: exp without max-subtraction is safe: q/k/queue are L2-normalized so
    # |logit| <= 1/T, well inside f32 range (matches the PyTorch reference exactly).
    neg_sc[...] += jnp.sum(jnp.where(keep, jnp.exp(logits_neg), 0.0),
                           axis=-1, keepdims=True)

    @pl.when(j == pl.num_programs(1) - 1)
    def _():
        lp = pos_sc[...]                                        # (tm, 1)
        denom = jnp.exp(lp) + neg_sc[...]
        row_loss = -(lp - jnp.log(denom))
        row_ids = i * tm + jax.lax.broadcasted_iota(jnp.int32, (tm, 1), 0)
        row_loss = jnp.where(row_ids < rows_valid, row_loss, 0.0)
        # lane-dense (1, 128) partial-sum output block.
        loss_ref[...] = jnp.broadcast_to(jnp.sum(row_loss), (1, 128))


def pallas_contrastive_loss(q, k, queue, labels, label_queue, T, *, tk=2048, tm_rows=256):
    n, c = q.shape
    Kq = queue.shape[1]

    c_pad = _round_up(c, 128)
    N_pad = _round_up(n, 8)
    tm_eff = min(_round_up(tm_rows, 8), N_pad)
    if N_pad % tm_eff:
        tm_eff = 8
        N_pad = _round_up(n, tm_eff)
    K_pad = _round_up(Kq, 128)
    tk_eff = min(tk, K_pad)
    if K_pad % tk_eff:
        K_pad = _round_up(K_pad, tk_eff)

    ni = N_pad // tm_eff
    nj = K_pad // tk_eff

    inv_T = jnp.float32(1.0 / T)
    qs = jnp.pad((q * inv_T).astype(jnp.float32), ((0, N_pad - n), (0, c_pad - c)))
    kp = jnp.pad(k.astype(jnp.float32), ((0, N_pad - n), (0, c_pad - c)))
    queue_bf = jnp.pad(queue.astype(jnp.bfloat16), ((0, c_pad - c), (0, K_pad - Kq)))
    lq = jnp.pad(labels.astype(jnp.int32).reshape(n, 1), ((0, N_pad - n), (0, 0)))
    lk = jnp.pad(label_queue.astype(jnp.int32).reshape(1, Kq), ((0, 0), (0, K_pad - Kq)))

    kernel = functools.partial(_contrastive_kernel, rows_valid=n, cols_valid=Kq,
                               tm=tm_eff, tk=tk_eff)
    partial = pl.pallas_call(
        kernel,
        out_shape=jax.ShapeDtypeStruct((ni, 128), jnp.float32),
        grid_spec=pltpu.PrefetchScalarGridSpec(
            num_scalar_prefetch=0,
            grid=(ni, nj),
            in_specs=[
                pl.BlockSpec((tm_eff, c_pad), lambda i, j: (i, 0)),   # q / T
                pl.BlockSpec((tm_eff, c_pad), lambda i, j: (i, 0)),   # k
                pl.BlockSpec((c_pad, tk_eff), lambda i, j: (0, j)),   # queue tile
                pl.BlockSpec((tm_eff, 1), lambda i, j: (i, 0)),       # q labels
                pl.BlockSpec((1, tk_eff), lambda i, j: (0, j)),       # label_queue tile
            ],
            out_specs=pl.BlockSpec((1, 128), lambda i, j: (i, 0)),
            scratch_shapes=[
                pltpu.VMEM((tm_eff, 1), jnp.float32),   # pos logits
                pltpu.VMEM((tm_eff, 1), jnp.float32),   # running masked exp_neg sum
            ],
        ),
        compiler_params=pltpu.CompilerParams(
            dimension_semantics=("parallel", "arbitrary"),
            vmem_limit_bytes=32 * 1024 * 1024,
        ),
    )(qs, kp, queue_bf, lq, lk)
    return jnp.sum(partial[:, 0]) / jnp.float32(n)


# ---------------------------------------------------------------------------
# SSFL model (parameters, bf16 shadows, state, forward)
# ---------------------------------------------------------------------------
def init_ssfl_params(key, dim=128, class_num=16):
    ks = jax.random.split(key, 8)
    scale = 0.02

    def lin(kw, fan_in, fan_out):
        return {
            "w": scale * jax.random.normal(kw, (fan_in, fan_out), jnp.float32),
            "b": jnp.zeros((fan_out,), jnp.float32),
        }

    encoder_q = lin(ks[0], 3, DIM_MLP)
    q_fc = {"l1": lin(ks[1], DIM_MLP, DIM_MLP), "l2": lin(ks[2], DIM_MLP, dim)}
    params = {
        "encoder_q": encoder_q,
        "encoder_k": jax.tree_util.tree_map(lambda x: x, encoder_q),  # copy_(q)
        "q_fc": q_fc,
        "k_fc": jax.tree_util.tree_map(lambda x: x, q_fc),            # copy_(q)
        "classifier": lin(ks[3], DIM_MLP, class_num),
    }
    return params


def build_fc_shadows(params, dim):
    """Stacked bf16 shadows (q_fc at head 0, k_fc at head 1) for the fused head kernel.

    Rebuilt once per momentum update (one fused cast/stack), never per pallas_call.
    """
    d_pad = _round_up(dim, 128)

    def stack(name, key):
        return jnp.stack([params["q_fc"][name][key], params["k_fc"][name][key]])

    w1 = stack("l1", "w").astype(jnp.bfloat16)                              # (2, D, D)
    b1 = stack("l1", "b").astype(jnp.float32)[:, None, :]                   # (2, 1, D)
    w2 = jnp.pad(stack("l2", "w"),
                 ((0, 0), (0, 0), (0, d_pad - dim))).astype(jnp.bfloat16)   # (2, D, d_pad)
    b2 = jnp.pad(stack("l2", "b"),
                 ((0, 0), (0, d_pad - dim))).astype(jnp.float32)[:, None, :]
    return {"w1": w1, "b1": b1, "w2": w2, "b2": b2}


def build_classifier_shadow(params, class_num):
    n_pad = _round_up(class_num, 128)
    w = params["classifier"]["w"]
    k_pad = _round_up(w.shape[0], 128)
    w_s = jnp.pad(w, ((0, k_pad - w.shape[0]), (0, n_pad - class_num))).astype(jnp.bfloat16)
    b_s = jnp.pad(params["classifier"]["b"],
                  (0, n_pad - class_num)).astype(jnp.float32).reshape(1, n_pad)
    return {"w": w_s, "b": b_s}


def init_ssfl_shadows(params, dim, class_num):
    return {"classifier": build_classifier_shadow(params, class_num),
            "fc": build_fc_shadows(params, dim)}


def init_ssfl_state(key, dim=128, K=512):
    queue = jax.random.normal(key, (dim, K), jnp.float32)
    queue = queue / jnp.linalg.norm(queue, axis=0, keepdims=True)  # normalize dim=0
    return {
        "queue": queue,
        "label_queue": jnp.zeros((K,), jnp.float32),
        "queue_ptr": jnp.zeros((1,), jnp.int32),
    }


def encoder_forward(enc_params, x_nchw):
    # TODO(synk): synthetic backbone: global avg pool (NCHW -> (N, 3)) then Linear->2048.
    # The K=3 matmul stays in plain XLA (a Pallas call here is pure launch overhead).
    pooled = jnp.mean(x_nchw, axis=(2, 3))                      # (N, 3)
    return jax.nn.relu(pooled @ enc_params["w"] + enc_params["b"])


def momentum_update(params, m=0.999):
    upd = lambda pk, pq: pk * m + pq * (1.0 - m)
    params = dict(params)
    params["encoder_k"] = jax.tree_util.tree_map(upd, params["encoder_k"],
                                                 params["encoder_q"])
    params["k_fc"] = jax.tree_util.tree_map(upd, params["k_fc"], params["q_fc"])
    return params


def ssfl_forward(params, shadows, state, im_q, im_k=None, labels=None, *,
                 num_segments=8, T=0.07, dim=128, class_num=16, training=True):
    H, W = im_q.shape[-2:]

    # --- query branch ---
    im_q_r = im_q.reshape((-1, 3, H, W))                              # (B*S, 3, H, W)
    out_q = encoder_forward(params["encoder_q"], im_q_r)              # (B*S, 2048)
    out_q = out_q.reshape((-1, num_segments, out_q.shape[-1])).mean(axis=1)  # (B, 2048)
    pred = pallas_linear(out_q, shadows["classifier"]["w"],
                         shadows["classifier"]["b"], class_num)       # (B, class_num)

    if not training:
        return pred, None, params, shadows, state

    # --- momentum update of key params (f32 masters) + refresh bf16 stacked shadows ---
    params = momentum_update(params)
    shadows = dict(shadows)
    shadows["fc"] = build_fc_shadows(params, dim)

    # --- key branch features (no grad in reference; numerically identical here) ---
    # TODO(synk): _batch_shuffle_ddp / _batch_unshuffle_ddp are identity at world_size=1.
    im_k_r = im_k.reshape((-1, 3, H, W))
    out_k = encoder_forward(params["encoder_k"], im_k_r)
    out_k = out_k.reshape((-1, num_segments, out_k.shape[-1])).mean(axis=1)

    # --- fused q_fc / k_fc projection heads (single pallas_call, two heads) ---
    q, k = pallas_projection_heads(out_q, out_k, shadows["fc"], dim=dim)
    k = jax.lax.stop_gradient(k)

    # --- contrastive loss (fused, batch-parallel / queue-tiled Pallas kernel) ---
    loss = pallas_contrastive_loss(q, k, state["queue"], labels,
                                   state["label_queue"], T)

    # --- dequeue and enqueue (buffer update, world_size=1 all_gather is identity) ---
    bsz = k.shape[0]
    ptr = state["queue_ptr"][0]
    new_queue = jax.lax.dynamic_update_slice(state["queue"], k.T, (0, ptr))
    new_label_queue = jax.lax.dynamic_update_slice(
        state["label_queue"], labels.astype(jnp.float32), (ptr,))
    new_ptr = jnp.mod(ptr + bsz, state["queue"].shape[1])
    new_state = {
        "queue": new_queue,
        "label_queue": new_label_queue,
        "queue_ptr": jnp.asarray([new_ptr], jnp.int32),
    }
    return pred, loss, params, shadows, new_state


# ---------------------------------------------------------------------------
# main
# ---------------------------------------------------------------------------
if __name__ == "__main__":
    B, num_segments, Himg, Wimg = 2, 8, 16, 16
    dim, Kqueue, class_num, T = 128, 512, 16, 0.07

    root = jax.random.PRNGKey(0)
    k_im_q, k_im_k, k_lbl, k_par, k_queue = jax.random.split(root, 5)

    # Inputs: (B, num_segments*3, H, W), reshaped internally to (B*S, 3, H, W).
    im_q = jax.random.normal(k_im_q, (B, num_segments * 3, Himg, Wimg), jnp.float32)
    im_k = jax.random.normal(k_im_k, (B, num_segments * 3, Himg, Wimg), jnp.float32)
    labels = jax.random.randint(k_lbl, (B,), 0, class_num, dtype=jnp.int32)

    params = init_ssfl_params(k_par, dim=dim, class_num=class_num)
    shadows = init_ssfl_shadows(params, dim=dim, class_num=class_num)
    state = init_ssfl_state(k_queue, dim=dim, K=Kqueue)

    pred, loss, params, shadows, state = ssfl_forward(
        params, shadows, state, im_q, im_k, labels,
        num_segments=num_segments, T=T, dim=dim, class_num=class_num, training=True)

    jax.block_until_ready((pred, loss, state["queue"]))
    assert pred.shape == (B, class_num)
    assert loss.shape == ()
    assert bool(jnp.isfinite(loss))
    assert bool(jnp.all(jnp.isfinite(pred)))
    print("KERNEL_OK")
</pallas_src>

<mosaic_0001>
module attributes {stable_mosaic.version = 11 : i64} {
  func.func @_linear_kernel(%arg0: i32, %arg1: i32, %arg2: i32, %arg3: memref<8x2048xbf16, #tpu.memory_space<vmem>>, %arg4: memref<2048x128xbf16, #tpu.memory_space<vmem>>, %arg5: memref<1x128xf32, #tpu.memory_space<vmem>>, %arg6: memref<8x128xf32, #tpu.memory_space<vmem>>, %arg7: memref<8x128xf32, #tpu.memory_space<vmem>>) attributes {dimension_semantics = [#tpu.dimension_semantics<parallel>, #tpu.dimension_semantics<parallel>, #tpu.dimension_semantics<arbitrary>], iteration_bounds = array<i64: 1, 1, 1>, scalar_prefetch = 0 : i64, scratch_operands = 1 : i64, tpu.core_type = #tpu.core_type<tc>, window_params = [{transform_indices = @transform_0, window_bounds = array<i64: 8, 2048>}, {transform_indices = @transform_1, window_bounds = array<i64: 2048, 128>}, {transform_indices = @transform_2, window_bounds = array<i64: 1, 128>}, {transform_indices = @transform_3, window_bounds = array<i64: 8, 128>}]} {
    %c0_i32 = arith.constant 0 : i32
    %0 = arith.cmpi eq, %arg2, %c0_i32 : i32
    %1 = arith.extui %0 : i1 to i32
    %c0_i32_0 = arith.constant 0 : i32
    %2 = arith.cmpi ne, %1, %c0_i32_0 : i32
    scf.if %2 {
      %cst_10 = arith.constant 0.000000e+00 : f32
      %12 = vector.broadcast %cst_10 : f32 to vector<8x128xf32>
      %c0_11 = arith.constant 0 : index
      %c0_12 = arith.constant 0 : index
      %13 = vector.load %arg7[%c0_11, %c0_12] : memref<8x128xf32, #tpu.memory_space<vmem>>, vector<8x128xf32>
      tpu.vector_store %arg7[%c0_11, %c0_12], %12 {strides = array<i32>} : memref<8x128xf32, #tpu.memory_space<vmem>>, vector<8x128xf32>,
    } else {
    }
    %c0 = arith.constant 0 : index
    %c0_1 = arith.constant 0 : index
    %3 = vector.load %arg7[%c0, %c0_1] : memref<8x128xf32, #tpu.memory_space<vmem>>, vector<8x128xf32>
    %c0_2 = arith.constant 0 : index
    %c0_3 = arith.constant 0 : index
    %4 = vector.load %arg3[%c0_2, %c0_3] : memref<8x2048xbf16, #tpu.memory_space<vmem>>, vector<8x2048xbf16>
    %c0_4 = arith.constant 0 : index
    %c0_5 = arith.constant 0 : index
    %5 = vector.load %arg4[%c0_4, %c0_5] : memref<2048x128xbf16, #tpu.memory_space<vmem>>, vector<2048x128xbf16>
    %cst = arith.constant dense<0.000000e+00> : vector<8x128xf32>
    %6 = tpu.matmul %4, %5, %cst {dimension_numbers = #tpu.dot_dimension_numbers<[1], [0], [0], [1], [0, 0, 1, 1], [], []>} : vector<8x2048xbf16>, vector<2048x128xbf16>, vector<8x128xf32> -> vector<8x128xf32>
    %7 = arith.addf %3, %6 : vector<8x128xf32>
    %c0_6 = arith.constant 0 : index
    %c0_7 = arith.constant 0 : index
    %8 = vector.load %arg7[%c0_6, %c0_7] : memref<8x128xf32, #tpu.memory_space<vmem>>, vector<8x128xf32>
    tpu.vector_store %arg7[%c0_6, %c0_7], %7 {strides = array<i32>} : memref<8x128xf32, #tpu.memory_space<vmem>>, vector<8x128xf32>,
    %c0_i32_8 = arith.constant 0 : i32
    %9 = arith.cmpi eq, %arg2, %c0_i32_8 : i32
    %10 = arith.extui %9 : i1 to i32
    %c0_i32_9 = arith.constant 0 : i32
    %11 = arith.cmpi ne, %10, %c0_i32_9 : i32
    scf.if %11 {
      %c0_10 = arith.constant 0 : index
      %c0_11 = arith.constant 0 : index
      %12 = vector.load %arg7[%c0_10, %c0_11] : memref<8x128xf32, #tpu.memory_space<vmem>>, vector<8x128xf32>
      %c0_12 = arith.constant 0 : index
      %c0_13 = arith.constant 0 : index
      %13 = vector.load %arg5[%c0_12, %c0_13] : memref<1x128xf32, #tpu.memory_space<vmem>>, vector<1x128xf32>
      %14 = vector.broadcast %13 : vector<1x128xf32> to vector<8x128xf32>
      %15 = arith.addf %12, %14 : vector<8x128xf32>
      %c0_14 = arith.constant 0 : index
      %c0_15 = arith.constant 0 : index
      %16 = vector.load %arg6[%c0_14, %c0_15] : memref<8x128xf32, #tpu.memory_space<vmem>>, vector<8x128xf32>
      tpu.vector_store %arg6[%c0_14, %c0_15], %15 {strides = array<i32>} : memref<8x128xf32, #tpu.memory_space<vmem>>, vector<8x128xf32>,
    } else {
    }
    return
  }
  func.func @transform_0(%arg0: i32, %arg1: i32, %arg2: i32) -> (i32, i32) {
    %c0_i32 = arith.constant 0 : i32
    return %arg0, %arg2 : i32, i32
  }
  func.func @transform_1(%arg0: i32, %arg1: i32, %arg2: i32) -> (i32, i32) {
    %c0_i32 = arith.constant 0 : i32
    return %arg2, %arg1 : i32, i32
  }
  func.func @transform_2(%arg0: i32, %arg1: i32, %arg2: i32) -> (i32, i32) {
    %c0_i32 = arith.constant 0 : i32
    %c0_i32_0 = arith.constant 0 : i32
    return %c0_i32, %arg1 : i32, i32
  }
  func.func @transform_3(%arg0: i32, %arg1: i32, %arg2: i32) -> (i32, i32) {
    %c0_i32 = arith.constant 0 : i32
    return %arg0, %arg1 : i32, i32
  }
}

</mosaic_0001>

<llo_original>
// kernel: tpu_custom_call.1
$region0: #{tpu_custom_call.1}
  #allocation0 [shape = 'u32[]', space=smem, size = 0x4, offset = 0x4, fixed_abs, tag = 'smem constant byte address 0x4 - core index']
  #allocation1 [shape = 'u32[72,128]{1,0:T(1,128)}', space=vmem, size = 0x9000, scoped, tag = 'internal scratch']
  #allocation2 [shape = 'f32[8,128]{1,0:T(8,128)}', space=vmem, size = 0x1000, scoped, tag = 'scratch operand']
  %s0 = inlined_call_operand.hbm [shape: bf16[8,2048], index: 0, kind: input, shape index: {}]
  %s1 = inlined_call_operand.hbm [shape: bf16[2048,128], index: 1, kind: input, shape index: {}]
  %s2 = inlined_call_operand.vmem [shape: f32[1,128], index: 2, kind: input, shape index: {}]
  %s3 = inlined_call_operand.hbm [shape: f32[8,128], index: 3, kind: output, shape index: {}]
  %s4 = sld [smem:[#allocation0]]
  $region38: #{tpu_custom_call.1} parent=0
    _
  %s6 = ssub.s32 1, %s4
  %s7 = scalar_select 0, %s6, %s4
  $region1: #{tpu_custom_call.1} parent=0
    #allocation3 [shape = 'u8[32768]{0}', space=vmem, size = 0x8000, scoped, tag = 'input window, operand 0, single buffered']
    #allocation4 [shape = 's32[1]{0}', space=sflag, size = 0x4, scoped, tag = 'scoped memory for tpu_custom_call.1']
    #allocation5 [shape = 's32[1]{0}', space=sflag, size = 0x4, scoped, tag = 'scoped memory for tpu_custom_call.1']
    #allocation6 [shape = 'u8[524288]{0}', space=vmem, size = 0x80000, scoped, tag = 'input window, operand 1, single buffered']
    #allocation7 [shape = 's32[1]{0}', space=sflag, size = 0x4, scoped, tag = 'scoped memory for tpu_custom_call.1']
    #allocation8 [shape = 'u8[4096]{0}', space=vmem, size = 0x1000, scoped, tag = 'output window, operand 0, single buffered']
    %8 = vsyncpa [#allocation4], 0
    %9 = vsyncpa [#allocation7], 0
    %10 = vsyncpa [#allocation5], 0
    // Predicated region
    $region2: #{tpu_custom_call.1} parent=1 // pred_check
      _
    $region3: #{tpu_custom_call.1} parent=1 // pred_check_branch
      %12 = sbr.rel (0) target = $region5
    $region4: #{tpu_custom_call.1} parent=1 // pred_region
      %14 = vsyncadd [#allocation4], 0
      %s16 = sshll.u32 %s0, 4
      %s17 = int_to_ptr.hbm [resolvable:$true] %s16
      %s18 = sshll.u32 [#allocation3], 4
      %s19 = int_to_ptr.vmem [resolvable:$true] %s18
      %21 = dma.hbm_to_vmem [thread:$0]  %s17, 1024, %s19, [#allocation4]
    $region5: #{tpu_custom_call.1} parent=1 // pred_fallthru
      _
    // Predicated region
    $region6: #{tpu_custom_call.1} parent=1 // pred_check
      _
    $region7: #{tpu_custom_call.1} parent=1 // pred_check_branch
      %23 = sbr.rel (0) target = $region9
    $region8: #{tpu_custom_call.1} parent=1 // pred_region
      %25 = vsyncadd [#allocation7], 0
      %s26 = sshll.u32 %s1, 4
      %s27 = int_to_ptr.hbm [resolvable:$true] %s26
      %s28 = sshll.u32 [#allocation6], 4
      %s29 = int_to_ptr.vmem [resolvable:$true] %s28
      %34 = dma.hbm_to_vmem [thread:$0]  %s27, 16384, %s29, [#allocation7], 64, 64, 4
    $region9: #{tpu_custom_call.1} parent=1 // pred_fallthru
      _
    // Predicated region
    $region10: #{tpu_custom_call.1} parent=1 // pred_check
      _
    $region11: #{tpu_custom_call.1} parent=1 // pred_check_branch
      %36 = sbr.rel (0) target = $region13
    $region12: #{tpu_custom_call.1} parent=1 // pred_region
      _
    $region13: #{tpu_custom_call.1} parent=1 // pred_fallthru
      _
    // Predicated region
    $region14: #{tpu_custom_call.1} parent=1 // pred_check
      _
    $region15: #{tpu_custom_call.1} parent=1 // pred_check_branch
      %38 = sbr.rel (0) target = $region17
    $region16: #{tpu_custom_call.1} parent=1 // pred_region
      %40 = dma.done [#allocation4], 1024
    $region17: #{tpu_custom_call.1} parent=1 // pred_fallthru
      _
    // Predicated region
    $region18: #{tpu_custom_call.1} parent=1 // pred_check
      _
    $region19: #{tpu_custom_call.1} parent=1 // pred_check_branch
      %42 = sbr.rel (0) target = $region21
    $region20: #{tpu_custom_call.1} parent=1 // pred_region
      %44 = dma.done [#allocation7], 16384
    $region21: #{tpu_custom_call.1} parent=1 // pred_fallthru
      _
    %p45 = scmp.eq.s32.totalorder 0, 0
    // Predicated region
    $region22: #{tpu_custom_call.1} parent=1 // pred_check
      %p46 = pneg %p45
    $region23: #{tpu_custom_call.1} parent=1 // pred_check_branch
      %48 = sbr.rel (%p46) target = $region25
    $region24: #{tpu_custom_call.1} parent=1 // pred_region
      %49 = vst [vmem:[#allocation2] sm:$0xff] 0.0
    $region25: #{tpu_custom_call.1} parent=1 // pred_fallthru
      _
    %v50 = vld [vmem:[#allocation2] sm:$0xff]
    %v51 = vld [vmem:[#allocation3] sm:$0xff]
    %v52 = vld [vmem:[#allocation3 + $0x8] sm:$0xff]
    %v53 = vld [vmem:[#allocation3 + $0x10] sm:$0xff]
    %v54 = vld [vmem:[#allocation3 + $0x18] sm:$0xff]
    %v55 = vld [vmem:[#allocation3 + $0x20] sm:$0xff]
    %v56 = vld [vmem:[#allocation3 + $0x28] sm:$0xff]
    %v57 = vld [vmem:[#allocation3 + $0x30] sm:$0xff]
    %v58 = vld [vmem:[#allocation3 + $0x38] sm:$0xff]
    %v59 = vld [vmem:[#allocation6] sm:$0xf]
    %v60 = vld [vmem:[#allocation6 + $0x4] sm:$0xf]
    %v61 = vld [vmem:[#allocation6 + $0x8] sm:$0xf]
    %v62 = vld [vmem:[#allocation6 + $0xc] sm:$0xf]
    %v63 = vld [vmem:[#allocation6 + $0x10] sm:$0xf]
    %v64 = vld [vmem:[#allocation6 + $0x14] sm:$0xf]
    %v65 = vld [vmem:[#allocation6 + $0x18] sm:$0xf]
    %v66 = vld [vmem:[#allocation6 + $0x1c] sm:$0xf]
    %v67 = vld [vmem:[#allocation6 + $0x20] sm:$0xf]
    %v68 = vld [vmem:[#allocation6 + $0x24] sm:$0xf]
    %v69 = vld [vmem:[#allocation6 + $0x28] sm:$0xf]
    %v70 = vld [vmem:[#allocation6 + $0x2c] sm:$0xf]
    %v71 = vld [vmem:[#allocation6 + $0x30] sm:$0xf]
    %v72 = vld [vmem:[#allocation6 + $0x34] sm:$0xf]
    %v73 = vld [vmem:[#allocation6 + $0x38] sm:$0xf]
    %v74 = vld [vmem:[#allocation6 + $0x3c] sm:$0xf]
    %v75 = vld [vmem:[#allocation6 + $0x40] sm:$0xf]
    %v76 = vld [vmem:[#allocation6 + $0x44] sm:$0xf]
    %v77 = vld [vmem:[#allocation6 + $0x48] sm:$0xf]
    %v78 = vld [vmem:[#allocation6 + $0x4c] sm:$0xf]
    %v79 = vld [vmem:[#allocation6 + $0x50] sm:$0xf]
    %v80 = vld [vmem:[#allocation6 + $0x54] sm:$0xf]
    %v81 = vld [vmem:[#allocation6 + $0x58] sm:$0xf]
    %v82 = vld [vmem:[#allocation6 + $0x5c] sm:$0xf]
    %v83 = vld [vmem:[#allocation6 + $0x60] sm:$0xf]
    %v84 = vld [vmem:[#allocation6 + $0x64] sm:$0xf]
    %v85 = vld [vmem:[#allocation6 + $0x68] sm:$0xf]
    %v86 = vld [vmem:[#allocation6 + $0x6c] sm:$0xf]
    %v87 = vld [vmem:[#allocation6 + $0x70] sm:$0xf]
    %v88 = vld [vmem:[#allocation6 + $0x74] sm:$0xf]
    %v89 = vld [vmem:[#allocation6 + $0x78] sm:$0xf]
    %v90 = vld [vmem:[#allocation6 + $0x7c] sm:$0xf]
    %v91 = vld [vmem:[#allocation6 + $0x80] sm:$0xf]
    %v92 = vld [vmem:[#allocation6 + $0x84] sm:$0xf]
    %v93 = vld [vmem:[#allocation6 + $0x88] sm:$0xf]
    %v94 = vld [vmem:[#allocation6 + $0x8c] sm:$0xf]
    %v95 = vld [vmem:[#allocation6 + $0x90] sm:$0xf]
    %v96 = vld [vmem:[#allocation6 + $0x94] sm:$0xf]
    %v97 = vld [vmem:[#allocation6 + $0x98] sm:$0xf]
    %v98 = vld [vmem:[#allocation6 + $0x9c] sm:$0xf]
    %v99 = vld [vmem:[#allocation6 + $0xa0] sm:$0xf]
    %v100 = vld [vmem:[#allocation6 + $0xa4] sm:$0xf]
    %v101 = vld [vmem:[#allocation6 + $0xa8] sm:$0xf]
    %v102 = vld [vmem:[#allocation6 + $0xac] sm:$0xf]
    %v103 = vld [vmem:[#allocation6 + $0xb0] sm:$0xf]
    %v104 = vld [vmem:[#allocation6 + $0xb4] sm:$0xf]
    %v105 = vld [vmem:[#allocation6 + $0xb8] sm:$0xf]
    %v106 = vld [vmem:[#allocation6 + $0xbc] sm:$0xf]
    %v107 = vld [vmem:[#allocation6 + $0xc0] sm:$0xf]
    %v108 = vld [vmem:[#allocation6 + $0xc4] sm:$0xf]
    %v109 = vld [vmem:[#allocation6 + $0xc8] sm:$0xf]
    %v110 = vld [vmem:[#allocation6 + $0xcc] sm:$0xf]
    %v111 = vld [vmem:[#allocation6 + $0xd0] sm:$0xf]
    %v112 = vld [vmem:[#allocation6 + $0xd4] sm:$0xf]
    %v113 = vld [vmem:[#allocation6 + $0xd8] sm:$0xf]
    %v114 = vld [vmem:[#allocation6 + $0xdc] sm:$0xf]
    %v115 = vld [vmem:[#allocation6 + $0xe0] sm:$0xf]
    %v116 = vld [vmem:[#allocation6 + $0xe4] sm:$0xf]
    %v117 = vld [vmem:[#allocation6 + $0xe8] sm:$0xf]
    %v118 = vld [vmem:[#allocation6 + $0xec] sm:$0xf]
    %v119 = vld [vmem:[#allocation6 + $0xf0] sm:$0xf]
    %v120 = vld [vmem:[#allocation6 + $0xf4] sm:$0xf]
    %v121 = vld [vmem:[#allocation6 + $0xf8] sm:$0xf]
    %v122 = vld [vmem:[#allocation6 + $0xfc] sm:$0xf]
    %v123 = vld [vmem:[#allocation6 + $0x100] sm:$0xf]
    %v124 = vld [vmem:[#allocation6 + $0x104] sm:$0xf]
    %v125 = vld [vmem:[#allocation6 + $0x108] sm:$0xf]
    %v126 = vld [vmem:[#allocation6 + $0x10c] sm:$0xf]
    %v127 = vld [vmem:[#allocation6 + $0x110] sm:$0xf]
    %v128 = vld [vmem:[#allocation6 + $0x114] sm:$0xf]
    %v129 = vld [vmem:[#allocation6 + $0x118] sm:$0xf]
    %v130 = vld [vmem:[#allocation6 + $0x11c] sm:$0xf]
    %v131 = vld [vmem:[#allocation6 + $0x120] sm:$0xf]
    %v132 = vld [vmem:[#allocation6 + $0x124] sm:$0xf]
    %v133 = vld [vmem:[#allocation6 + $0x128] sm:$0xf]
    %v134 = vld [vmem:[#allocation6 + $0x12c] sm:$0xf]
    %v135 = vld [vmem:[#allocation6 + $0x130] sm:$0xf]
    %v136 = vld [vmem:[#allocation6 + $0x134] sm:$0xf]
    %v137 = vld [vmem:[#allocation6 + $0x138] sm:$0xf]
    %v138 = vld [vmem:[#allocation6 + $0x13c] sm:$0xf]
    %v139 = vld [vmem:[#allocation6 + $0x140] sm:$0xf]
    %v140 = vld [vmem:[#allocation6 + $0x144] sm:$0xf]
    %v141 = vld [vmem:[#allocation6 + $0x148] sm:$0xf]
    %v142 = vld [vmem:[#allocation6 + $0x14c] sm:$0xf]
    %v143 = vld [vmem:[#allocation6 + $0x150] sm:$0xf]
    %v144 = vld [vmem:[#allocation6 + $0x154] sm:$0xf]
    %v145 = vld [vmem:[#allocation6 + $0x158] sm:$0xf]
    %v146 = vld [vmem:[#allocation6 + $0x15c] sm:$0xf]
    %v147 = vld [vmem:[#allocation6 + $0x160] sm:$0xf]
    %v148 = vld [vmem:[#allocation6 + $0x164] sm:$0xf]
    %v149 = vld [vmem:[#allocation6 + $0x168] sm:$0xf]
    %v150 = vld [vmem:[#allocation6 + $0x16c] sm:$0xf]
    %v151 = vld [vmem:[#allocation6 + $0x170] sm:$0xf]
    %v152 = vld [vmem:[#allocation6 + $0x174] sm:$0xf]
    %v153 = vld [vmem:[#allocation6 + $0x178] sm:$0xf]
    %v154 = vld [vmem:[#allocation6 + $0x17c] sm:$0xf]
    %v155 = vld [vmem:[#allocation6 + $0x180] sm:$0xf]
    %v156 = vld [vmem:[#allocation6 + $0x184] sm:$0xf]
    %v157 = vld [vmem:[#allocation6 + $0x188] sm:$0xf]
    %v158 = vld [vmem:[#allocation6 + $0x18c] sm:$0xf]
    %v159 = vld [vmem:[#allocation6 + $0x190] sm:$0xf]
    %v160 = vld [vmem:[#allocation6 + $0x194] sm:$0xf]
    %v161 = vld [vmem:[#allocation6 + $0x198] sm:$0xf]
    %v162 = vld [vmem:[#allocation6 + $0x19c] sm:$0xf]
    %v163 = vld [vmem:[#allocation6 + $0x1a0] sm:$0xf]
    %v164 = vld [vmem:[#allocation6 + $0x1a4] sm:$0xf]
    %v165 = vld [vmem:[#allocation6 + $0x1a8] sm:$0xf]
    %v166 = vld [vmem:[#allocation6 + $0x1ac] sm:$0xf]
    %v167 = vld [vmem:[#allocation6 + $0x1b0] sm:$0xf]
    %v168 = vld [vmem:[#allocation6 + $0x1b4] sm:$0xf]
    %v169 = vld [vmem:[#allocation6 + $0x1b8] sm:$0xf]
    %v170 = vld [vmem:[#allocation6 + $0x1bc] sm:$0xf]
    %v171 = vld [vmem:[#allocation6 + $0x1c0] sm:$0xf]
    %v172 = vld [vmem:[#allocation6 + $0x1c4] sm:$0xf]
    %v173 = vld [vmem:[#allocation6 + $0x1c8] sm:$0xf]
    %v174 = vld [vmem:[#allocation6 + $0x1cc] sm:$0xf]
    %v175 = vld [vmem:[#allocation6 + $0x1d0] sm:$0xf]
    %v176 = vld [vmem:[#allocation6 + $0x1d4] sm:$0xf]
    %v177 = vld [vmem:[#allocation6 + $0x1d8] sm:$0xf]
    %v178 = vld [vmem:[#allocation6 + $0x1dc] sm:$0xf]
    %v179 = vld [vmem:[#allocation6 + $0x1e0] sm:$0xf]
    %v180 = vld [vmem:[#allocation6 + $0x1e4] sm:$0xf]
    %v181 = vld [vmem:[#allocation6 + $0x1e8] sm:$0xf]
    %v182 = vld [vmem:[#allocation6 + $0x1ec] sm:$0xf]
    %v183 = vld [vmem:[#allocation6 + $0x1f0] sm:$0xf]
    %v184 = vld [vmem:[#allocation6 + $0x1f4] sm:$0xf]
    %v185 = vld [vmem:[#allocation6 + $0x1f8] sm:$0xf]
    %v186 = vld [vmem:[#allocation6 + $0x1fc] sm:$0xf]
    %v187 = vld [vmem:[#allocation6 + $0x200] sm:$0xf]
    %v188 = vld [vmem:[#allocation6 + $0x204] sm:$0xf]
    %v189 = vld [vmem:[#allocation6 + $0x208] sm:$0xf]
    %v190 = vld [vmem:[#allocation6 + $0x20c] sm:$0xf]
    %v191 = vld [vmem:[#allocation6 + $0x210] sm:$0xf]
    %v192 = vld [vmem:[#allocation6 + $0x214] sm:$0xf]
    %v193 = vld [vmem:[#allocation6 + $0x218] sm:$0xf]
    %v194 = vld [vmem:[#allocation6 + $0x21c] sm:$0xf]
    %v195 = vld [vmem:[#allocation6 + $0x220] sm:$0xf]
    %v196 = vld [vmem:[#allocation6 + $0x224] sm:$0xf]
    %v197 = vld [vmem:[#allocation6 + $0x228] sm:$0xf]
    %v198 = vld [vmem:[#allocation6 + $0x22c] sm:$0xf]
    %v199 = vld [vmem:[#allocation6 + $0x230] sm:$0xf]
    %v200 = vld [vmem:[#allocation6 + $0x234] sm:$0xf]
    %v201 = vld [vmem:[#allocation6 + $0x238] sm:$0xf]
    %v202 = vld [vmem:[#allocation6 + $0x23c] sm:$0xf]
    %v203 = vld [vmem:[#allocation6 + $0x240] sm:$0xf]
    %v204 = vld [vmem:[#allocation6 + $0x244] sm:$0xf]
    %v205 = vld [vmem:[#allocation6 + $0x248] sm:$0xf]
    %v206 = vld [vmem:[#allocation6 + $0x24c] sm:$0xf]
    %v207 = vld [vmem:[#allocation6 + $0x250] sm:$0xf]
    %v208 = vld [vmem:[#allocation6 + $0x254] sm:$0xf]
    %v209 = vld [vmem:[#allocation6 + $0x258] sm:$0xf]
    %v210 = vld [vmem:[#allocation6 + $0x25c] sm:$0xf]
    %v211 = vld [vmem:[#allocation6 + $0x260] sm:$0xf]
    %v212 = vld [vmem:[#allocation6 + $0x264] sm:$0xf]
    %v213 = vld [vmem:[#allocation6 + $0x268] sm:$0xf]
    %v214 = vld [vmem:[#allocation6 + $0x26c] sm:$0xf]
    %v215 = vld [vmem:[#allocation6 + $0x270] sm:$0xf]
    %v216 = vld [vmem:[#allocation6 + $0x274] sm:$0xf]
    %v217 = vld [vmem:[#allocation6 + $0x278] sm:$0xf]
    %v218 = vld [vmem:[#allocation6 + $0x27c] sm:$0xf]
    %v219 = vld [vmem:[#allocation6 + $0x280] sm:$0xf]
    %v220 = vld [vmem:[#allocation6 + $0x284] sm:$0xf]
    %v221 = vld [vmem:[#allocation6 + $0x288] sm:$0xf]
    %v222 = vld [vmem:[#allocation6 + $0x28c] sm:$0xf]
    %v223 = vld [vmem:[#allocation6 + $0x290] sm:$0xf]
    %v224 = vld [vmem:[#allocation6 + $0x294] sm:$0xf]
    %v225 = vld [vmem:[#allocation6 + $0x298] sm:$0xf]
    %v226 = vld [vmem:[#allocation6 + $0x29c] sm:$0xf]
    %v227 = vld [vmem:[#allocation6 + $0x2a0] sm:$0xf]
    %v228 = vld [vmem:[#allocation6 + $0x2a4] sm:$0xf]
    %v229 = vld [vmem:[#allocation6 + $0x2a8] sm:$0xf]
    %v230 = vld [vmem:[#allocation6 + $0x2ac] sm:$0xf]
    %v231 = vld [vmem:[#allocation6 + $0x2b0] sm:$0xf]
    %v232 = vld [vmem:[#allocation6 + $0x2b4] sm:$0xf]
    %v233 = vld [vmem:[#allocation6 + $0x2b8] sm:$0xf]
    %v234 = vld [vmem:[#allocation6 + $0x2bc] sm:$0xf]
    %v235 = vld [vmem:[#allocation6 + $0x2c0] sm:$0xf]
    %v236 = vld [vmem:[#allocation6 + $0x2c4] sm:$0xf]
    %v237 = vld [vmem:[#allocation6 + $0x2c8] sm:$0xf]
    %v238 = vld [vmem:[#allocation6 + $0x2cc] sm:$0xf]
    %v239 = vld [vmem:[#allocation6 + $0x2d0] sm:$0xf]
    %v240 = vld [vmem:[#allocation6 + $0x2d4] sm:$0xf]
    %v241 = vld [vmem:[#allocation6 + $0x2d8] sm:$0xf]
    %v242 = vld [vmem:[#allocation6 + $0x2dc] sm:$0xf]
    %v243 = vld [vmem:[#allocation6 + $0x2e0] sm:$0xf]
    %v244 = vld [vmem:[#allocation6 + $0x2e4] sm:$0xf]
    %v245 = vld [vmem:[#allocation6 + $0x2e8] sm:$0xf]
    %v246 = vld [vmem:[#allocation6 + $0x2ec] sm:$0xf]
    %v247 = vld [vmem:[#allocation6 + $0x2f0] sm:$0xf]
    %v248 = vld [vmem:[#allocation6 + $0x2f4] sm:$0xf]
    %v249 = vld [vmem:[#allocation6 + $0x2f8] sm:$0xf]
    %v250 = vld [vmem:[#allocation6 + $0x2fc] sm:$0xf]
    %v251 = vld [vmem:[#allocation6 + $0x300] sm:$0xf]
    %v252 = vld [vmem:[#allocation6 + $0x304] sm:$0xf]
    %v253 = vld [vmem:[#allocation6 + $0x308] sm:$0xf]
    %v254 = vld [vmem:[#allocation6 + $0x30c] sm:$0xf]
    %v255 = vld [vmem:[#allocation6 + $0x310] sm:$0xf]
    %v256 = vld [vmem:[#allocation6 + $0x314] sm:$0xf]
    %v257 = vld [vmem:[#allocation6 + $0x318] sm:$0xf]
    %v258 = vld [vmem:[#allocation6 + $0x31c] sm:$0xf]
    %v259 = vld [vmem:[#allocation6 + $0x320] sm:$0xf]
    %v260 = vld [vmem:[#allocation6 + $0x324] sm:$0xf]
    %v261 = vld [vmem:[#allocation6 + $0x328] sm:$0xf]
    %v262 = vld [vmem:[#allocation6 + $0x32c] sm:$0xf]
    %v263 = vld [vmem:[#allocation6 + $0x330] sm:$0xf]
    %v264 = vld [vmem:[#allocation6 + $0x334] sm:$0xf]
    %v265 = vld [vmem:[#allocation6 + $0x338] sm:$0xf]
    %v266 = vld [vmem:[#allocation6 + $0x33c] sm:$0xf]
    %v267 = vld [vmem:[#allocation6 + $0x340] sm:$0xf]
    %v268 = vld [vmem:[#allocation6 + $0x344] sm:$0xf]
    %v269 = vld [vmem:[#allocation6 + $0x348] sm:$0xf]
    %v270 = vld [vmem:[#allocation6 + $0x34c] sm:$0xf]
    %v271 = vld [vmem:[#allocation6 + $0x350] sm:$0xf]
    %v272 = vld [vmem:[#allocation6 + $0x354] sm:$0xf]
    %v273 = vld [vmem:[#allocation6 + $0x358] sm:$0xf]
    %v274 = vld [vmem:[#allocation6 + $0x35c] sm:$0xf]
    %v275 = vld [vmem:[#allocation6 + $0x360] sm:$0xf]
    %v276 = vld [vmem:[#allocation6 + $0x364] sm:$0xf]
    %v277 = vld [vmem:[#allocation6 + $0x368] sm:$0xf]
    %v278 = vld [vmem:[#allocation6 + $0x36c] sm:$0xf]
    %v279 = vld [vmem:[#allocation6 + $0x370] sm:$0xf]
    %v280 = vld [vmem:[#allocation6 + $0x374] sm:$0xf]
    %v281 = vld [vmem:[#allocation6 + $0x378] sm:$0xf]
    %v282 = vld [vmem:[#allocation6 + $0x37c] sm:$0xf]
    %v283 = vld [vmem:[#allocation6 + $0x380] sm:$0xf]
    %v284 = vld [vmem:[#allocation6 + $0x384] sm:$0xf]
    %v285 = vld [vmem:[#allocation6 + $0x388] sm:$0xf]
    %v286 = vld [vmem:[#allocation6 + $0x38c] sm:$0xf]
    %v287 = vld [vmem:[#allocation6 + $0x390] sm:$0xf]
    %v288 = vld [vmem:[#allocation6 + $0x394] sm:$0xf]
    %v289 = vld [vmem:[#allocation6 + $0x398] sm:$0xf]
    %v290 = vld [vmem:[#allocation6 + $0x39c] sm:$0xf]
    %v291 = vld [vmem:[#allocation6 + $0x3a0] sm:$0xf]
    %v292 = vld [vmem:[#allocation6 + $0x3a4] sm:$0xf]
    %v293 = vld [vmem:[#allocation6 + $0x3a8] sm:$0xf]
    %v294 = vld [vmem:[#allocation6 + $0x3ac] sm:$0xf]
    %v295 = vld [vmem:[#allocation6 + $0x3b0] sm:$0xf]
    %v296 = vld [vmem:[#allocation6 + $0x3b4] sm:$0xf]
    %v297 = vld [vmem:[#allocation6 + $0x3b8] sm:$0xf]
    %v298 = vld [vmem:[#allocation6 + $0x3bc] sm:$0xf]
    %v299 = vld [vmem:[#allocation6 + $0x3c0] sm:$0xf]
    %v300 = vld [vmem:[#allocation6 + $0x3c4] sm:$0xf]
    %v301 = vld [vmem:[#allocation6 + $0x3c8] sm:$0xf]
    %v302 = vld [vmem:[#allocation6 + $0x3cc] sm:$0xf]
    %v303 = vld [vmem:[#allocation6 + $0x3d0] sm:$0xf]
    %v304 = vld [vmem:[#allocation6 + $0x3d4] sm:$0xf]
    %v305 = vld [vmem:[#allocation6 + $0x3d8] sm:$0xf]
    %v306 = vld [vmem:[#allocation6 + $0x3dc] sm:$0xf]
    %v307 = vld [vmem:[#allocation6 + $0x3e0] sm:$0xf]
    %v308 = vld [vmem:[#allocation6 + $0x3e4] sm:$0xf]
    %v309 = vld [vmem:[#allocation6 + $0x3e8] sm:$0xf]
    %v310 = vld [vmem:[#allocation6 + $0x3ec] sm:$0xf]
    %v311 = vld [vmem:[#allocation6 + $0x3f0] sm:$0xf]
    %v312 = vld [vmem:[#allocation6 + $0x3f4] sm:$0xf]
    %v313 = vld [vmem:[#allocation6 + $0x3f8] sm:$0xf]
    %v314 = vld [vmem:[#allocation6 + $0x3fc] sm:$0xf]
    %v323 = vunpack.c.l.b16 %v51
    %v324 = vunpack.c.h.b16 %v51
    %v325 = vunpack.c.l.b16 %v52
    %v326 = vunpack.c.h.b16 %v52
    %v327 = vunpack.c.l.b16 %v53
    %v328 = vunpack.c.h.b16 %v53
    %v329 = vunpack.c.l.b16 %v54
    %v330 = vunpack.c.h.b16 %v54
    %v331 = vunpack.c.l.b16 %v55
    %v332 = vunpack.c.h.b16 %v55
    %v333 = vunpack.c.l.b16 %v56
    %v334 = vunpack.c.h.b16 %v56
    %v335 = vunpack.c.l.b16 %v57
    %v336 = vunpack.c.h.b16 %v57
    %v337 = vunpack.c.l.b16 %v58
    %v338 = vunpack.c.h.b16 %v58
    %v339 = vpack.c.b16 %v323, %v323
    %v340 = vpack.c.b16 %v324, %v324
    %v341 = vpack.c.b16 %v325, %v325
    %v342 = vpack.c.b16 %v326, %v326
    %v343 = vpack.c.b16 %v327, %v327
    %v344 = vpack.c.b16 %v328, %v328
    %v345 = vpack.c.b16 %v329, %v329
    %v346 = vpack.c.b16 %v330, %v330
    %v347 = vpack.c.b16 %v331, %v331
    %v348 = vpack.c.b16 %v332, %v332
    %v349 = vpack.c.b16 %v333, %v333
    %v350 = vpack.c.b16 %v334, %v334
    %v351 = vpack.c.b16 %v335, %v335
    %v352 = vpack.c.b16 %v336, %v336
    %v353 = vpack.c.b16 %v337, %v337
    %v354 = vpack.c.b16 %v338, %v338
    %v627 = vunpack.c.l.b16 %v59
    %v628 = vunpack.c.l.b16 %v60
    %v629 = vunpack.c.l.b16 %v61
    %v630 = vunpack.c.l.b16 %v62
    %v631 = vunpack.c.l.b16 %v63
    %v632 = vunpack.c.l.b16 %v64
    %v633 = vunpack.c.l.b16 %v65
    %v634 = vunpack.c.l.b16 %v66
    %v635 = vunpack.c.l.b16 %v67
    %v636 = vunpack.c.l.b16 %v68
    %v637 = vunpack.c.l.b16 %v69
    %v638 = vunpack.c.l.b16 %v70
    %v639 = vunpack.c.l.b16 %v71
    %v640 = vunpack.c.l.b16 %v72
    %v641 = vunpack.c.l.b16 %v73
    %v642 = vunpack.c.l.b16 %v74
    %v643 = vunpack.c.l.b16 %v75
    %v644 = vunpack.c.l.b16 %v76
    %v645 = vunpack.c.l.b16 %v77
    %v646 = vunpack.c.l.b16 %v78
    %v647 = vunpack.c.l.b16 %v79
    %v648 = vunpack.c.l.b16 %v80
    %v649 = vunpack.c.l.b16 %v81
    %v650 = vunpack.c.l.b16 %v82
    %v651 = vunpack.c.l.b16 %v83
    %v652 = vunpack.c.l.b16 %v84
    %v653 = vunpack.c.l.b16 %v85
    %v654 = vunpack.c.l.b16 %v86
    %v655 = vunpack.c.l.b16 %v87
    %v656 = vunpack.c.l.b16 %v88
    %v657 = vunpack.c.l.b16 %v89
    %v658 = vunpack.c.l.b16 %v90
    %v659 = vunpack.c.l.b16 %v91
    %v660 = vunpack.c.l.b16 %v92
    %v661 = vunpack.c.l.b16 %v93
    %v662 = vunpack.c.l.b16 %v94
    %v663 = vunpack.c.l.b16 %v95
    %v664 = vunpack.c.l.b16 %v96
    %v665 = vunpack.c.l.b16 %v97
    %v666 = vunpack.c.l.b16 %v98
    %v667 = vunpack.c.l.b16 %v99
    %v668 = vunpack.c.l.b16 %v100
    %v669 = vunpack.c.l.b16 %v101
    %v670 = vunpack.c.l.b16 %v102
    %v671 = vunpack.c.l.b16 %v103
    %v672 = vunpack.c.l.b16 %v104
    %v673 = vunpack.c.l.b16 %v105
    %v674 = vunpack.c.l.b16 %v106
    %v675 = vunpack.c.l.b16 %v107
    %v676 = vunpack.c.l.b16 %v108
    %v677 = vunpack.c.l.b16 %v109
    %v678 = vunpack.c.l.b16 %v110
    %v679 = vunpack.c.l.b16 %v111
    %v680 = vunpack.c.l.b16 %v112
    %v681 = vunpack.c.l.b16 %v113
    %v682 = vunpack.c.l.b16 %v114
    %v683 = vunpack.c.l.b16 %v115
    %v684 = vunpack.c.l.b16 %v116
    %v685 = vunpack.c.l.b16 %v117
    %v686 = vunpack.c.l.b16 %v118
    %v687 = vunpack.c.l.b16 %v119
    %v688 = vunpack.c.l.b16 %v120
    %v689 = vunpack.c.l.b16 %v121
    %v690 = vunpack.c.l.b16 %v122
    %v691 = vunpack.c.l.b16 %v123
    %v692 = vunpack.c.l.b16 %v124
    %v693 = vunpack.c.l.b16 %v125
    %v694 = vunpack.c.l.b16 %v126
    %v695 = vunpack.c.l.b16 %v127
    %v696 = vunpack.c.l.b16 %v128
    %v697 = vunpack.c.l.b16 %v129
    %v698 = vunpack.c.l.b16 %v130
    %v699 = vunpack.c.l.b16 %v131
    %v700 = vunpack.c.l.b16 %v132
    %v701 = vunpack.c.l.b16 %v133
    %v702 = vunpack.c.l.b16 %v134
    %v703 = vunpack.c.l.b16 %v135
    %v704 = vunpack.c.l.b16 %v136
    %v705 = vunpack.c.l.b16 %v137
    %v706 = vunpack.c.l.b16 %v138
    %v707 = vunpack.c.l.b16 %v139
    %v708 = vunpack.c.l.b16 %v140
    %v709 = vunpack.c.l.b16 %v141
    %v710 = vunpack.c.l.b16 %v142
    %v711 = vunpack.c.l.b16 %v143
    %v712 = vunpack.c.l.b16 %v144
    %v713 = vunpack.c.l.b16 %v145
    %v714 = vunpack.c.l.b16 %v146
    %v715 = vunpack.c.l.b16 %v147
    %v716 = vunpack.c.l.b16 %v148
    %v717 = vunpack.c.l.b16 %v149
    %v718 = vunpack.c.l.b16 %v150
    %v719 = vunpack.c.l.b16 %v151
    %v720 = vunpack.c.l.b16 %v152
    %v721 = vunpack.c.l.b16 %v153
    %v722 = vunpack.c.l.b16 %v154
    %v723 = vunpack.c.l.b16 %v155
    %v724 = vunpack.c.l.b16 %v156
    %v725 = vunpack.c.l.b16 %v157
    %v726 = vunpack.c.l.b16 %v158
    %v727 = vunpack.c.l.b16 %v159
    %v728 = vunpack.c.l.b16 %v160
    %v729 = vunpack.c.l.b16 %v161
    %v730 = vunpack.c.l.b16 %v162
    %v731 = vunpack.c.l.b16 %v163
    %v732 = vunpack.c.l.b16 %v164
    %v733 = vunpack.c.l.b16 %v165
    %v734 = vunpack.c.l.b16 %v166
    %v735 = vunpack.c.l.b16 %v167
    %v736 = vunpack.c.l.b16 %v168
    %v737 = vunpack.c.l.b16 %v169
    %v738 = vunpack.c.l.b16 %v170
    %v739 = vunpack.c.l.b16 %v171
    %v740 = vunpack.c.l.b16 %v172
    %v741 = vunpack.c.l.b16 %v173
    %v742 = vunpack.c.l.b16 %v174
    %v743 = vunpack.c.l.b16 %v175
    %v744 = vunpack.c.l.b16 %v176
    %v745 = vunpack.c.l.b16 %v177
    %v746 = vunpack.c.l.b16 %v178
    %v747 = vunpack.c.l.b16 %v179
    %v748 = vunpack.c.l.b16 %v180
    %v749 = vunpack.c.l.b16 %v181
    %v750 = vunpack.c.l.b16 %v182
    %v751 = vunpack.c.l.b16 %v183
    %v752 = vunpack.c.l.b16 %v184
    %v753 = vunpack.c.l.b16 %v185
    %v754 = vunpack.c.l.b16 %v186
    %v755 = vunpack.c.l.b16 %v187
    %v756 = vunpack.c.l.b16 %v188
    %v757 = vunpack.c.l.b16 %v189
    %v758 = vunpack.c.l.b16 %v190
    %v759 = vunpack.c.l.b16 %v191
    %v760 = vunpack.c.l.b16 %v192
    %v761 = vunpack.c.l.b16 %v193
    %v762 = vunpack.c.l.b16 %v194
    %v763 = vunpack.c.l.b16 %v195
    %v764 = vunpack.c.l.b16 %v196
    %v765 = vunpack.c.l.b16 %v197
    %v766 = vunpack.c.l.b16 %v198
    %v767 = vunpack.c.l.b16 %v199
    %v768 = vunpack.c.l.b16 %v200
    %v769 = vunpack.c.l.b16 %v201
    %v770 = vunpack.c.l.b16 %v202
    %v771 = vunpack.c.l.b16 %v203
    %v772 = vunpack.c.l.b16 %v204
    %v773 = vunpack.c.l.b16 %v205
    %v774 = vunpack.c.l.b16 %v206
    %v775 = vunpack.c.l.b16 %v207
    %v776 = vunpack.c.l.b16 %v208
    %v777 = vunpack.c.l.b16 %v209
    %v778 = vunpack.c.l.b16 %v210
    %v779 = vunpack.c.l.b16 %v211
    %v780 = vunpack.c.l.b16 %v212
    %v781 = vunpack.c.l.b16 %v213
    %v782 = vunpack.c.l.b16 %v214
    %v783 = vunpack.c.l.b16 %v215
    %v784 = vunpack.c.l.b16 %v216
    %v785 = vunpack.c.l.b16 %v217
    %v786 = vunpack.c.l.b16 %v218
    %v787 = vunpack.c.l.b16 %v219
    %v788 = vunpack.c.l.b16 %v220
    %v789 = vunpack.c.l.b16 %v221
    %v790 = vunpack.c.l.b16 %v222
    %v791 = vunpack.c.l.b16 %v223
    %v792 = vunpack.c.l.b16 %v224
    %v793 = vunpack.c.l.b16 %v225
    %v794 = vunpack.c.l.b16 %v226
    %v795 = vunpack.c.l.b16 %v227
    %v796 = vunpack.c.l.b16 %v228
    %v797 = vunpack.c.l.b16 %v229
    %v798 = vunpack.c.l.b16 %v230
    %v799 = vunpack.c.l.b16 %v231
    %v800 = vunpack.c.l.b16 %v232
    %v801 = vunpack.c.l.b16 %v233
    %v802 = vunpack.c.l.b16 %v234
    %v803 = vunpack.c.l.b16 %v235
    %v804 = vunpack.c.l.b16 %v236
    %v805 = vunpack.c.l.b16 %v237
    %v806 = vunpack.c.l.b16 %v238
    %v807 = vunpack.c.l.b16 %v239
    %v808 = vunpack.c.l.b16 %v240
    %v809 = vunpack.c.l.b16 %v241
    %v810 = vunpack.c.l.b16 %v242
    %v811 = vunpack.c.l.b16 %v243
    %v812 = vunpack.c.l.b16 %v244
    %v813 = vunpack.c.l.b16 %v245
    %v814 = vunpack.c.l.b16 %v246
    %v815 = vunpack.c.l.b16 %v247
    %v816 = vunpack.c.l.b16 %v248
    %v817 = vunpack.c.l.b16 %v249
    %v818 = vunpack.c.l.b16 %v250
    %v819 = vunpack.c.l.b16 %v251
    %v820 = vunpack.c.l.b16 %v252
    %v821 = vunpack.c.l.b16 %v253
    %v822 = vunpack.c.l.b16 %v254
    %v823 = vunpack.c.l.b16 %v255
    %v824 = vunpack.c.l.b16 %v256
    %v825 = vunpack.c.l.b16 %v257
    %v826 = vunpack.c.l.b16 %v258
    %v827 = vunpack.c.l.b16 %v259
    %v828 = vunpack.c.l.b16 %v260
    %v829 = vunpack.c.l.b16 %v261
    %v830 = vunpack.c.l.b16 %v262
    %v831 = vunpack.c.l.b16 %v263
    %v832 = vunpack.c.l.b16 %v264
    %v833 = vunpack.c.l.b16 %v265
    %v834 = vunpack.c.l.b16 %v266
    %v835 = vunpack.c.l.b16 %v267
    %v836 = vunpack.c.l.b16 %v268
    %v837 = vunpack.c.l.b16 %v269
    %v838 = vunpack.c.l.b16 %v270
    %v839 = vunpack.c.l.b16 %v271
    %v840 = vunpack.c.l.b16 %v272
    %v841 = vunpack.c.l.b16 %v273
    %v842 = vunpack.c.l.b16 %v274
    %v843 = vunpack.c.l.b16 %v275
    %v844 = vunpack.c.l.b16 %v276
    %v845 = vunpack.c.l.b16 %v277
    %v846 = vunpack.c.l.b16 %v278
    %v847 = vunpack.c.l.b16 %v279
    %v848 = vunpack.c.l.b16 %v280
    %v849 = vunpack.c.l.b16 %v281
    %v850 = vunpack.c.l.b16 %v282
    %v851 = vunpack.c.l.b16 %v283
    %v852 = vunpack.c.l.b16 %v284
    %v853 = vunpack.c.l.b16 %v285
    %v854 = vunpack.c.l.b16 %v286
    %v855 = vunpack.c.l.b16 %v287
    %v856 = vunpack.c.l.b16 %v288
    %v857 = vunpack.c.l.b16 %v289
    %v858 = vunpack.c.l.b16 %v290
    %v859 = vunpack.c.l.b16 %v291
    %v860 = vunpack.c.l.b16 %v292
    %v861 = vunpack.c.l.b16 %v293
    %v862 = vunpack.c.l.b16 %v294
    %v863 = vunpack.c.l.b16 %v295
    %v864 = vunpack.c.l.b16 %v296
    %v865 = vunpack.c.l.b16 %v297
    %v866 = vunpack.c.l.b16 %v298
    %v867 = vunpack.c.l.b16 %v299
    %v868 = vunpack.c.l.b16 %v300
    %v869 = vunpack.c.l.b16 %v301
    %v870 = vunpack.c.l.b16 %v302
    %v871 = vunpack.c.l.b16 %v303
    %v872 = vunpack.c.l.b16 %v304
    %v873 = vunpack.c.l.b16 %v305
    %v874 = vunpack.c.l.b16 %v306
    %v875 = vunpack.c.l.b16 %v307
    %v876 = vunpack.c.l.b16 %v308
    %v877 = vunpack.c.l.b16 %v309
    %v878 = vunpack.c.l.b16 %v310
    %v879 = vunpack.c.l.b16 %v311
    %v880 = vunpack.c.l.b16 %v312
    %v881 = vunpack.c.l.b16 %v313
    %v882 = vunpack.c.l.b16 %v314
    %v883 = vpack.c.b16 %v628, %v627
    %v884 = vpack.c.b16 %v630, %v629
    %v885 = vpack.c.b16 %v632, %v631
    %v886 = vpack.c.b16 %v634, %v633
    %v887 = vpack.c.b16 %v636, %v635
    %v888 = vpack.c.b16 %v638, %v637
    %v889 = vpack.c.b16 %v640, %v639
    %v890 = vpack.c.b16 %v642, %v641
    %v891 = vpack.c.b16 %v644, %v643
    %v892 = vpack.c.b16 %v646, %v645
    %v893 = vpack.c.b16 %v648, %v647
    %v894 = vpack.c.b16 %v650, %v649
    %v895 = vpack.c.b16 %v652, %v651
    %v896 = vpack.c.b16 %v654, %v653
    %v897 = vpack.c.b16 %v656, %v655
    %v898 = vpack.c.b16 %v658, %v657
    %v899 = vpack.c.b16 %v660, %v659
    %v900 = vpack.c.b16 %v662, %v661
    %v901 = vpack.c.b16 %v664, %v663
    %v902 = vpack.c.b16 %v666, %v665
    %v903 = vpack.c.b16 %v668, %v667
    %v904 = vpack.c.b16 %v670, %v669
    %v905 = vpack.c.b16 %v672, %v671
    %v906 = vpack.c.b16 %v674, %v673
    %v907 = vpack.c.b16 %v676, %v675
    %v908 = vpack.c.b16 %v678, %v677
    %v909 = vpack.c.b16 %v680, %v679
    %v910 = vpack.c.b16 %v682, %v681
    %v911 = vpack.c.b16 %v684, %v683
    %v912 = vpack.c.b16 %v686, %v685
    %v913 = vpack.c.b16 %v688, %v687
    %v914 = vpack.c.b16 %v690, %v689
    %v915 = vpack.c.b16 %v692, %v691
    %v916 = vpack.c.b16 %v694, %v693
    %v917 = vpack.c.b16 %v696, %v695
    %v918 = vpack.c.b16 %v698, %v697
    %v919 = vpack.c.b16 %v700, %v699
    %v920 = vpack.c.b16 %v702, %v701
    %v921 = vpack.c.b16 %v704, %v703
    %v922 = vpack.c.b16 %v706, %v705
    %v923 = vpack.c.b16 %v708, %v707
    %v924 = vpack.c.b16 %v710, %v709
    %v925 = vpack.c.b16 %v712, %v711
    %v926 = vpack.c.b16 %v714, %v713
    %v927 = vpack.c.b16 %v716, %v715
    %v928 = vpack.c.b16 %v718, %v717
    %v929 = vpack.c.b16 %v720, %v719
    %v930 = vpack.c.b16 %v722, %v721
    %v931 = vpack.c.b16 %v724, %v723
    %v932 = vpack.c.b16 %v726, %v725
    %v933 = vpack.c.b16 %v728, %v727
    %v934 = vpack.c.b16 %v730, %v729
    %v935 = vpack.c.b16 %v732, %v731
    %v936 = vpack.c.b16 %v734, %v733
    %v937 = vpack.c.b16 %v736, %v735
    %v938 = vpack.c.b16 %v738, %v737
    %v939 = vpack.c.b16 %v740, %v739
    %v940 = vpack.c.b16 %v742, %v741
    %v941 = vpack.c.b16 %v744, %v743
    %v942 = vpack.c.b16 %v746, %v745
    %v943 = vpack.c.b16 %v748, %v747
    %v944 = vpack.c.b16 %v750, %v749
    %v945 = vpack.c.b16 %v752, %v751
    %v946 = vpack.c.b16 %v754, %v753
    %v947 = vpack.c.b16 %v756, %v755
    %v948 = vpack.c.b16 %v758, %v757
    %v949 = vpack.c.b16 %v760, %v759
    %v950 = vpack.c.b16 %v762, %v761
    %v951 = vpack.c.b16 %v764, %v763
    %v952 = vpack.c.b16 %v766, %v765
    %v953 = vpack.c.b16 %v768, %v767
    %v954 = vpack.c.b16 %v770, %v769
    %v955 = vpack.c.b16 %v772, %v771
    %v956 = vpack.c.b16 %v774, %v773
    %v957 = vpack.c.b16 %v776, %v775
    %v958 = vpack.c.b16 %v778, %v777
    %v959 = vpack.c.b16 %v780, %v779
    %v960 = vpack.c.b16 %v782, %v781
    %v961 = vpack.c.b16 %v784, %v783
    %v962 = vpack.c.b16 %v786, %v785
    %v963 = vpack.c.b16 %v788, %v787
    %v964 = vpack.c.b16 %v790, %v789
    %v965 = vpack.c.b16 %v792, %v791
    %v966 = vpack.c.b16 %v794, %v793
    %v967 = vpack.c.b16 %v796, %v795
    %v968 = vpack.c.b16 %v798, %v797
    %v969 = vpack.c.b16 %v800, %v799
    %v970 = vpack.c.b16 %v802, %v801
    %v971 = vpack.c.b16 %v804, %v803
    %v972 = vpack.c.b16 %v806, %v805
    %v973 = vpack.c.b16 %v808, %v807
    %v974 = vpack.c.b16 %v810, %v809
    %v975 = vpack.c.b16 %v812, %v811
    %v976 = vpack.c.b16 %v814, %v813
    %v977 = vpack.c.b16 %v816, %v815
    %v978 = vpack.c.b16 %v818, %v817
    %v979 = vpack.c.b16 %v820, %v819
    %v980 = vpack.c.b16 %v822, %v821
    %v981 = vpack.c.b16 %v824, %v823
    %v982 = vpack.c.b16 %v826, %v825
    %v983 = vpack.c.b16 %v828, %v827
    %v984 = vpack.c.b16 %v830, %v829
    %v985 = vpack.c.b16 %v832, %v831
    %v986 = vpack.c.b16 %v834, %v833
    %v987 = vpack.c.b16 %v836, %v835
    %v988 = vpack.c.b16 %v838, %v837
    %v989 = vpack.c.b16 %v840, %v839
    %v990 = vpack.c.b16 %v842, %v841
    %v991 = vpack.c.b16 %v844, %v843
    %v992 = vpack.c.b16 %v846, %v845
    %v993 = vpack.c.b16 %v848, %v847
    %v994 = vpack.c.b16 %v850, %v849
    %v995 = vpack.c.b16 %v852, %v851
    %v996 = vpack.c.b16 %v854, %v853
    %v997 = vpack.c.b16 %v856, %v855
    %v998 = vpack.c.b16 %v858, %v857
    %v999 = vpack.c.b16 %v860, %v859
    %v1000 = vpack.c.b16 %v862, %v861
    %v1001 = vpack.c.b16 %v864, %v863
    %v1002 = vpack.c.b16 %v866, %v865
    %v1003 = vpack.c.b16 %v868, %v867
    %v1004 = vpack.c.b16 %v870, %v869
    %v1005 = vpack.c.b16 %v872, %v871
    %v1006 = vpack.c.b16 %v874, %v873
    %v1007 = vpack.c.b16 %v876, %v875
    %v1008 = vpack.c.b16 %v878, %v877
    %v1009 = vpack.c.b16 %v880, %v879
    %v1010 = vpack.c.b16 %v882, %v881
    %1139 = vmatpush.bf16.msra.mxu0 %v890
    %1140 = vmatpush.bf16.msra.mxu0 %v889
    %1141 = vmatpush.bf16.msra.mxu0 %v888
    %1142 = vmatpush.bf16.msra.mxu0 %v887
    %1143 = vmatpush.bf16.msra.mxu0 %v886
    %1144 = vmatpush.bf16.msra.mxu0 %v885
    %1145 = vmatpush.bf16.msra.mxu0 %v884
    %1146 = vmatpush.bf16.msra.mxu0 %v883
    %1147 = vmatmul.bf16.gmra.mxu0 %v339
    %v1148 = vpop.f32.mrf.mxu0
    %v1149 = vadd.f32 0.0, %v1148
    %v1150 = vpop.f32.mrf.mxu0
    %1151 = vdwg.mxu0
    %1152 = vmatpush.bf16.msra.mxu0 %v898
    %1153 = vmatpush.bf16.msra.mxu0 %v897
    %1154 = vmatpush.bf16.msra.mxu0 %v896
    %1155 = vmatpush.bf16.msra.mxu0 %v895
    %1156 = vmatpush.bf16.msra.mxu0 %v894
    %1157 = vmatpush.bf16.msra.mxu0 %v893
    %1158 = vmatpush.bf16.msra.mxu0 %v892
    %1159 = vmatpush.bf16.msra.mxu0 %v891
    %1160 = vmatmul.bf16.gmra.mxu0 %v340
    %v1161 = vpop.f32.mrf.mxu0
    %v1162 = vadd.f32 %v1149, %v1161
    %v1163 = vpop.f32.mrf.mxu0
    %1164 = vdwg.mxu0
    %1165 = vmatpush.bf16.msra.mxu0 %v906
    %1166 = vmatpush.bf16.msra.mxu0 %v905
    %1167 = vmatpush.bf16.msra.mxu0 %v904
    %1168 = vmatpush.bf16.msra.mxu0 %v903
    %1169 = vmatpush.bf16.msra.mxu0 %v902
    %1170 = vmatpush.bf16.msra.mxu0 %v901
    %1171 = vmatpush.bf16.msra.mxu0 %v900
    %1172 = vmatpush.bf16.msra.mxu0 %v899
    %1173 = vmatmul.bf16.gmra.mxu0 %v341
    %v1174 = vpop.f32.mrf.mxu0
    %v1175 = vadd.f32 %v1162, %v1174
    %v1176 = vpop.f32.mrf.mxu0
    %1177 = vdwg.mxu0
    %1178 = vmatpush.bf16.msra.mxu0 %v914
    %1179 = vmatpush.bf16.msra.mxu0 %v913
    %1180 = vmatpush.bf16.msra.mxu0 %v912
    %1181 = vmatpush.bf16.msra.mxu0 %v911
    %1182 = vmatpush.bf16.msra.mxu0 %v910
    %1183 = vmatpush.bf16.msra.mxu0 %v909
    %1184 = vmatpush.bf16.msra.mxu0 %v908
    %1185 = vmatpush.bf16.msra.mxu0 %v907
    %1186 = vmatmul.bf16.gmra.mxu0 %v342
    %v1187 = vpop.f32.mrf.mxu0
    %v1188 = vadd.f32 %v1175, %v1187
    %v1189 = vpop.f32.mrf.mxu0
    %1190 = vdwg.mxu0
    %1191 = vmatpush.bf16.msra.mxu0 %v922
    %1192 = vmatpush.bf16.msra.mxu0 %v921
    %1193 = vmatpush.bf16.msra.mxu0 %v920
    %1194 = vmatpush.bf16.msra.mxu0 %v919
    %1195 = vmatpush.bf16.msra.mxu0 %v918
    %1196 = vmatpush.bf16.msra.mxu0 %v917
    %1197 = vmatpush.bf16.msra.mxu0 %v916
    %1198 = vmatpush.bf16.msra.mxu0 %v915
    %1199 = vmatmul.bf16.gmra.mxu0 %v343
    %v1200 = vpop.f32.mrf.mxu0
    %v1201 = vadd.f32 %v1188, %v1200
    %v1202 = vpop.f32.mrf.mxu0
    %1203 = vdwg.mxu0
    %1204 = vmatpush.bf16.msra.mxu0 %v930
    %1205 = vmatpush.bf16.msra.mxu0 %v929
    %1206 = vmatpush.bf16.msra.mxu0 %v928
    %1207 = vmatpush.bf16.msra.mxu0 %v927
    %1208 = vmatpush.bf16.msra.mxu0 %v926
    %1209 = vmatpush.bf16.msra.mxu0 %v925
    %1210 = vmatpush.bf16.msra.mxu0 %v924
    %1211 = vmatpush.bf16.msra.mxu0 %v923
    %1212 = vmatmul.bf16.gmra.mxu0 %v344
    %v1213 = vpop.f32.mrf.mxu0
    %v1214 = vadd.f32 %v1201, %v1213
    %v1215 = vpop.f32.mrf.mxu0
    %1216 = vdwg.mxu0
    %1217 = vmatpush.bf16.msra.mxu0 %v938
    %1218 = vmatpush.bf16.msra.mxu0 %v937
    %1219 = vmatpush.bf16.msra.mxu0 %v936
    %1220 = vmatpush.bf16.msra.mxu0 %v935
    %1221 = vmatpush.bf16.msra.mxu0 %v934
    %1222 = vmatpush.bf16.msra.mxu0 %v933
    %1223 = vmatpush.bf16.msra.mxu0 %v932
    %1224 = vmatpush.bf16.msra.mxu0 %v931
    %1225 = vmatmul.bf16.gmra.mxu0 %v345
    %v1226 = vpop.f32.mrf.mxu0
    %v1227 = vadd.f32 %v1214, %v1226
    %v1228 = vpop.f32.mrf.mxu0
    %1229 = vdwg.mxu0
    %1230 = vmatpush.bf16.msra.mxu0 %v946
    %1231 = vmatpush.bf16.msra.mxu0 %v945
    %1232 = vmatpush.bf16.msra.mxu0 %v944
    %1233 = vmatpush.bf16.msra.mxu0 %v943
    %1234 = vmatpush.bf16.msra.mxu0 %v942
    %1235 = vmatpush.bf16.msra.mxu0 %v941
    %1236 = vmatpush.bf16.msra.mxu0 %v940
    %1237 = vmatpush.bf16.msra.mxu0 %v939
    %1238 = vmatmul.bf16.gmra.mxu0 %v346
    %v1239 = vpop.f32.mrf.mxu0
    %v1240 = vadd.f32 %v1227, %v1239
    %v1241 = vpop.f32.mrf.mxu0
    %1242 = vdwg.mxu0
    %1243 = vmatpush.bf16.msra.mxu0 %v954
    %1244 = vmatpush.bf16.msra.mxu0 %v953
    %1245 = vmatpush.bf16.msra.mxu0 %v952
    %1246 = vmatpush.bf16.msra.mxu0 %v951
    %1247 = vmatpush.bf16.msra.mxu0 %v950
    %1248 = vmatpush.bf16.msra.mxu0 %v949
    %1249 = vmatpush.bf16.msra.mxu0 %v948
    %1250 = vmatpush.bf16.msra.mxu0 %v947
    %1251 = vmatmul.bf16.gmra.mxu0 %v347
    %v1252 = vpop.f32.mrf.mxu0
    %v1253 = vadd.f32 %v1240, %v1252
    %v1254 = vpop.f32.mrf.mxu0
    %1255 = vdwg.mxu0
    %1256 = vmatpush.bf16.msra.mxu0 %v962
    %1257 = vmatpush.bf16.msra.mxu0 %v961
    %1258 = vmatpush.bf16.msra.mxu0 %v960
    %1259 = vmatpush.bf16.msra.mxu0 %v959
    %1260 = vmatpush.bf16.msra.mxu0 %v958
    %1261 = vmatpush.bf16.msra.mxu0 %v957
    %1262 = vmatpush.bf16.msra.mxu0 %v956
    %1263 = vmatpush.bf16.msra.mxu0 %v955
    %1264 = vmatmul.bf16.gmra.mxu0 %v348
    %v1265 = vpop.f32.mrf.mxu0
    %v1266 = vadd.f32 %v1253, %v1265
    %v1267 = vpop.f32.mrf.mxu0
    %1268 = vdwg.mxu0
    %1269 = vmatpush.bf16.msra.mxu0 %v970
    %1270 = vmatpush.bf16.msra.mxu0 %v969
    %1271 = vmatpush.bf16.msra.mxu0 %v968
    %1272 = vmatpush.bf16.msra.mxu0 %v967
    %1273 = vmatpush.bf16.msra.mxu0 %v966
    %1274 = vmatpush.bf16.msra.mxu0 %v965
    %1275 = vmatpush.bf16.msra.mxu0 %v964
    %1276 = vmatpush.bf16.msra.mxu0 %v963
    %1277 = vmatmul.bf16.gmra.mxu0 %v349
    %v1278 = vpop.f32.mrf.mxu0
    %v1279 = vadd.f32 %v1266, %v1278
    %v1280 = vpop.f32.mrf.mxu0
    %1281 = vdwg.mxu0
    %1282 = vmatpush.bf16.msra.mxu0 %v978
    %1283 = vmatpush.bf16.msra.mxu0 %v977
    %1284 = vmatpush.bf16.msra.mxu0 %v976
    %1285 = vmatpush.bf16.msra.mxu0 %v975
    %1286 = vmatpush.bf16.msra.mxu0 %v974
    %1287 = vmatpush.bf16.msra.mxu0 %v973
    %1288 = vmatpush.bf16.msra.mxu0 %v972
    %1289 = vmatpush.bf16.msra.mxu0 %v971
    %1290 = vmatmul.bf16.gmra.mxu0 %v350
    %v1291 = vpop.f32.mrf.mxu0
    %v1292 = vadd.f32 %v1279, %v1291
    %v1293 = vpop.f32.mrf.mxu0
    %1294 = vdwg.mxu0
    %1295 = vmatpush.bf16.msra.mxu0 %v986
    %1296 = vmatpush.bf16.msra.mxu0 %v985
    %1297 = vmatpush.bf16.msra.mxu0 %v984
    %1298 = vmatpush.bf16.msra.mxu0 %v983
    %1299 = vmatpush.bf16.msra.mxu0 %v982
    %1300 = vmatpush.bf16.msra.mxu0 %v981
    %1301 = vmatpush.bf16.msra.mxu0 %v980
    %1302 = vmatpush.bf16.msra.mxu0 %v979
    %1303 = vmatmul.bf16.gmra.mxu0 %v351
    %v1304 = vpop.f32.mrf.mxu0
    %v1305 = vadd.f32 %v1292, %v1304
    %v1306 = vpop.f32.mrf.mxu0
    %1307 = vdwg.mxu0
    %1308 = vmatpush.bf16.msra.mxu0 %v994
    %1309 = vmatpush.bf16.msra.mxu0 %v993
    %1310 = vmatpush.bf16.msra.mxu0 %v992
    %1311 = vmatpush.bf16.msra.mxu0 %v991
    %1312 = vmatpush.bf16.msra.mxu0 %v990
    %1313 = vmatpush.bf16.msra.mxu0 %v989
    %1314 = vmatpush.bf16.msra.mxu0 %v988
    %1315 = vmatpush.bf16.msra.mxu0 %v987
    %1316 = vmatmul.bf16.gmra.mxu0 %v352
    %v1317 = vpop.f32.mrf.mxu0
    %v1318 = vadd.f32 %v1305, %v1317
    %v1319 = vpop.f32.mrf.mxu0
    %1320 = vdwg.mxu0
    %1321 = vmatpush.bf16.msra.mxu0 %v1002
    %1322 = vmatpush.bf16.msra.mxu0 %v1001
    %1323 = vmatpush.bf16.msra.mxu0 %v1000
    %1324 = vmatpush.bf16.msra.mxu0 %v999
    %1325 = vmatpush.bf16.msra.mxu0 %v998
    %1326 = vmatpush.bf16.msra.mxu0 %v997
    %1327 = vmatpush.bf16.msra.mxu0 %v996
    %1328 = vmatpush.bf16.msra.mxu0 %v995
    %1329 = vmatmul.bf16.gmra.mxu0 %v353
    %v1330 = vpop.f32.mrf.mxu0
    %v1331 = vadd.f32 %v1318, %v1330
    %v1332 = vpop.f32.mrf.mxu0
    %1333 = vdwg.mxu0
    %1334 = vmatpush.bf16.msra.mxu0 %v1010
    %1335 = vmatpush.bf16.msra.mxu0 %v1009
    %1336 = vmatpush.bf16.msra.mxu0 %v1008
    %1337 = vmatpush.bf16.msra.mxu0 %v1007
    %1338 = vmatpush.bf16.msra.mxu0 %v1006
    %1339 = vmatpush.bf16.msra.mxu0 %v1005
    %1340 = vmatpush.bf16.msra.mxu0 %v1004
    %1341 = vmatpush.bf16.msra.mxu0 %v1003
    %1342 = vmatmul.bf16.gmra.mxu0 %v354
    %v1343 = vpop.f32.mrf.mxu0
    %v1344 = vadd.f32 %v1331, %v1343
    %v1345 = vpop.f32.mrf.mxu0
    %1346 = vdwg.mxu0
    %v1347 = vadd.f32 %v50, %v1344
    %1348 = vst [vmem:[#allocation2] sm:$0xff] %v1347
    // Predicated region
    $region26: #{tpu_custom_call.1} parent=1 // pred_check
      %p1349 = pneg %p45
    $region27: #{tpu_custom_call.1} parent=1 // pred_check_branch
      %1351 = sbr.rel (%p1349) target = $region29
    $region28: #{tpu_custom_call.1} parent=1 // pred_region
      %v1352 = vld [vmem:[#allocation2] sm:$0xff]
      %v1353 = vld [vmem:[%s2] sm:$0x1]
      %v1355 = vperm.slane %v1353, 0
      %v1357 = vadd.f32 %v1352, %v1355
      %1358 = vst [vmem:[#allocation8] sm:$0xff] %v1357
    $region29: #{tpu_custom_call.1} parent=1 // pred_fallthru
      _
    // Predicated region
    $region30: #{tpu_custom_call.1} parent=1 // pred_check
      _
    $region31: #{tpu_custom_call.1} parent=1 // pred_check_branch
      %1360 = sbr.rel (0) target = $region33
    $region32: #{tpu_custom_call.1} parent=1 // pred_region
      %1362 = vsyncadd [#allocation5], 0
      %s1364 = sshll.u32 [#allocation8], 4
      %s1365 = int_to_ptr.vmem [resolvable:$true] %s1364
      %s1366 = sshll.u32 %s3, 4
      %s1367 = int_to_ptr.hbm [resolvable:$true] %s1366
      %1369 = dma.vmem_to_hbm [thread:$0]  %s1365, 128, %s1367, [#allocation5]
    $region33: #{tpu_custom_call.1} parent=1 // pred_fallthru
      _
    // Predicated region
    $region34: #{tpu_custom_call.1} parent=1 // pred_check
      _
    $region35: #{tpu_custom_call.1} parent=1 // pred_check_branch
      %1371 = sbr.rel (0) target = $region37
    $region36: #{tpu_custom_call.1} parent=1 // pred_region
      %1373 = dma.done [#allocation5], 128
    $region37: #{tpu_custom_call.1} parent=1 // pred_fallthru
      _
    %1374 = vsyncpa [#allocation4], 1
    %1375 = vsyncpa [#allocation7], 1
    %1376 = vsyncpa [#allocation5], 1

</llo_original>
